<compile_context>
chip_gen: v7x
topology: tpu7x:2x2x1
jax: 0.10.0
libtpu: 0.0.40
codegen_flags: <defaults>
</compile_context>

<pallas_src>
import functools
import math

import jax
import jax.numpy as jnp
from jax.experimental import pallas as pl
from jax.experimental.pallas import tpu as pltpu


def _round_up(v, m):
    return (v + m - 1) // m * m


def _sort_ctx_kernel(
    x_ref,        # (TB, N)      f32   batch tile of inputs
    slab_ref,     # (9, N*U)     f32   packed bias / K=1-weight rows
    w_ec2_ref,    # (N*U, N*U)   bf16  kron(I_N, w_ec2)
    w_ec1p_ref,   # (U, U)       bf16
    w_ec2p_ref,   # (U, U)       bf16
    w_fc2a_ref,   # (N*U, N*U)   bf16  kron(I_N, w_fc2[:U])
    w_fc2b_ref,   # (U, N*U)     bf16  tile(w_fc2[U:], N)  (context half)
    w_fc3_ref,    # (N*U, N*N)   bf16  kron(I_N, w_fc3)
    o_ref,        # (TB, N*N)    f32   lane-dense output tile
    *, n_numbers, n_units, batch_tile,
):
    N, U, TB = n_numbers, n_units, batch_tile
    NU = N * U
    NN = N * N
    f32 = jnp.float32
    bf16 = jnp.bfloat16
    relu = lambda v: jnp.maximum(v, 0.0)

    def mm(a, w_ref):
        return jnp.dot(a.astype(bf16), w_ref[...], preferred_element_type=f32)

    x = x_ref[...]                                # (TB, N) f32
    slab = slab_ref[...]                          # (9, NU) f32
    w_ec1_rep = slab[0:1, :]
    b_ec1_rep = slab[1:2, :]
    w_fc1_rep = slab[2:3, :]
    b_fc1_rep = slab[3:4, :]
    b_ec2_rep = slab[4:5, :]
    b_fc2_rep = slab[5:6, :]
    b_ec1p = slab[6:7, :U]
    b_ec2p = slab[7:8, :U]
    b_fc3_rep = slab[8:9, :NN]

    # --- width-packed replication of x: x_rep[b, n*U + u] = x[b, n] ---------
    # (exact f32; lane slices + lane broadcasts + minor-dim concat, no MXU)
    x_rep = jnp.concatenate(
        [jnp.broadcast_to(x[:, n:n + 1], (TB, U)) for n in range(N)], axis=1)

    # --- element encoder ec1 and fc1 (K=1 layers -> exact f32 VPU) ----------
    h0 = relu(x_rep * w_ec1_rep + b_ec1_rep)      # (TB, NU)
    x1 = relu(x_rep * w_fc1_rep + b_fc1_rep)      # (TB, NU)

    # --- ec2 as a block-diagonal (NU, NU) matmul -----------------------------
    h = relu(mm(h0, w_ec2_ref) + b_ec2_rep)       # (TB, NU)

    # --- deep-set pooling: exact f32 segment sum over N aligned lane groups -
    s = h[:, 0:U]
    for n in range(1, N):
        s = s + h[:, n * U:(n + 1) * U]           # (TB, U)

    # --- context MLP ---------------------------------------------------------
    c = relu(mm(s, w_ec1p_ref) + b_ec1p)          # (TB, U)
    c = relu(mm(c, w_ec2p_ref) + b_ec2p)          # (TB, U)

    # --- fc2 on cat([x1, context]) == x1 @ blkdiag(W2a) + c @ tile(W2b) ------
    h2 = relu(mm(x1, w_fc2a_ref) + mm(c, w_fc2b_ref) + b_fc2_rep)   # (TB, NU)

    # --- fc3 as block-diagonal matmul -> lane-dense (TB, N*N) output ---------
    o_ref[...] = mm(h2, w_fc3_ref) + b_fc3_rep


def sorting_network_with_deepset_context(x, params, *, n_numbers, n_units,
                                          batch_tile=256):
    """x: (B, n_numbers) -> log_alpha: (B, n_numbers, n_numbers)."""
    B = x.shape[0]
    N, U = n_numbers, n_units
    NU, NN = N * U, N * N
    (w_ec1, b_ec1, w_ec2, b_ec2, w_ec1p, b_ec1p, w_ec2p, b_ec2p,
     w_fc1, b_fc1, w_fc2a, w_fc2b, b_fc2, w_fc3, b_fc3) = params

    f32, bf = jnp.float32, jnp.bfloat16

    # --- batch tiling: big tiles, but keep >=2 grid steps when possible -----
    B_pad8 = _round_up(max(B, 1), 8)
    TB = max(8, min(_round_up(int(batch_tile), 8), B_pad8))
    if B_pad8 >= 16 and B_pad8 // TB < 2:
        TB = _round_up(B_pad8 // 2, 8)      # v7x: feed both TensorCores
    B_pad = _round_up(B_pad8, TB)
    grid = (B_pad // TB,)

    x_p = jnp.pad(x.astype(f32), ((0, B_pad - B), (0, 0)))

    # --- grid-invariant packed weights (built once, outside the kernel) -----
    eye_n = jnp.eye(N, dtype=f32)
    tile_n = lambda a: jnp.tile(a.astype(f32), (1, N))
    pad_nu = lambda a: jnp.pad(a.astype(f32), ((0, 0), (0, NU - a.shape[1])))

    slab = jnp.concatenate([
        tile_n(w_ec1), tile_n(b_ec1),          # rows 0,1
        tile_n(w_fc1), tile_n(b_fc1),          # rows 2,3
        tile_n(b_ec2), tile_n(b_fc2),          # rows 4,5
        pad_nu(b_ec1p), pad_nu(b_ec2p),        # rows 6,7 (first U lanes valid)
        pad_nu(tile_n(b_fc3)),                 # row  8   (first NN lanes valid)
    ], axis=0)                                 # (9, NU) f32

    w_ec2_bd = jnp.kron(eye_n, w_ec2.astype(f32)).astype(bf)       # (NU, NU)
    w_fc2a_bd = jnp.kron(eye_n, w_fc2a.astype(f32)).astype(bf)     # (NU, NU)
    w_fc3_bd = jnp.kron(eye_n, w_fc3.astype(f32)).astype(bf)       # (NU, NN)
    w_fc2b_rep = jnp.tile(w_fc2b.astype(f32), (1, N)).astype(bf)   # (U, NU)
    w_ec1p_b = w_ec1p.astype(bf)
    w_ec2p_b = w_ec2p.astype(bf)

    weights = (slab, w_ec2_bd, w_ec1p_b, w_ec2p_b,
               w_fc2a_bd, w_fc2b_rep, w_fc3_bd)

    def const_spec(arr):
        nd = arr.ndim
        return pl.BlockSpec(arr.shape, lambda b, _nd=nd: (0,) * _nd)

    in_specs = [pl.BlockSpec((TB, N), lambda b: (b, 0))]           # x tile
    in_specs += [const_spec(w) for w in weights]                   # invariant

    kernel = functools.partial(_sort_ctx_kernel, n_numbers=N, n_units=U,
                               batch_tile=TB)

    out = pl.pallas_call(
        kernel,
        out_shape=jax.ShapeDtypeStruct((B_pad, NN), f32),
        grid_spec=pltpu.PrefetchScalarGridSpec(
            num_scalar_prefetch=0,
            grid=grid,
            in_specs=in_specs,
            out_specs=pl.BlockSpec((TB, NN), lambda b: (b, 0)),
        ),
        compiler_params=pltpu.CompilerParams(
            dimension_semantics=("parallel",),
        ),
    )(x_p, *weights)

    return out[:B].reshape(B, N, N)


def init_params(key, n_numbers, n_units):
    """Deterministic init. Weights stored pre-transposed to (in, out), f32."""
    N, U = n_numbers, n_units

    def linear(key, fan_in, fan_out):
        kw, kb = jax.random.split(key)
        bound = 1.0 / math.sqrt(fan_in)
        w = jax.random.uniform(kw, (fan_in, fan_out), jnp.float32, -bound, bound)
        b = jax.random.uniform(kb, (1, fan_out), jnp.float32, -bound, bound)
        return w, b

    keys = jax.random.split(key, 7)
    w_ec1, b_ec1 = linear(keys[0], 1, U)
    w_ec2, b_ec2 = linear(keys[1], U, U)
    w_ec1p, b_ec1p = linear(keys[2], U, U)
    w_ec2p, b_ec2p = linear(keys[3], U, U)
    w_fc1, b_fc1 = linear(keys[4], 1, U)
    w_fc2, b_fc2 = linear(keys[5], 2 * U, U)
    w_fc3, b_fc3 = linear(keys[6], U, N)
    w_fc2a, w_fc2b = w_fc2[:U], w_fc2[U:]
    return (w_ec1, b_ec1, w_ec2, b_ec2, w_ec1p, b_ec1p, w_ec2p, b_ec2p,
            w_fc1, b_fc1, w_fc2a, w_fc2b, b_fc2, w_fc3, b_fc3)


def reference_forward(x, params, n_numbers, n_units):
    """Pure-JAX mirror of the PyTorch forward with the same bf16/f32 policy."""
    (w_ec1, b_ec1, w_ec2, b_ec2, w_ec1p, b_ec1p, w_ec2p, b_ec2p,
     w_fc1, b_fc1, w_fc2a, w_fc2b, b_fc2, w_fc3, b_fc3) = params
    B = x.shape[0]
    N, U = n_numbers, n_units
    relu = lambda v: jnp.maximum(v, 0.0)
    bf = lambda a: a.astype(jnp.bfloat16)
    mm = lambda a, w: jnp.dot(bf(a), bf(w), preferred_element_type=jnp.float32)

    x_flat = x.astype(jnp.float32).reshape(-1, 1)
    h0 = relu(x_flat * w_ec1 + b_ec1)
    h = relu(mm(h0, w_ec2) + b_ec2)
    s = jnp.sum(h.reshape(B, N, U), axis=1)
    c = relu(mm(s, w_ec1p) + b_ec1p)
    c = relu(mm(c, w_ec2p) + b_ec2p)
    x1 = relu(x_flat * w_fc1 + b_fc1)
    c2 = mm(c, w_fc2b)
    c2_rows = jnp.broadcast_to(c2[:, None, :], (B, N, U)).reshape(-1, U)
    h2 = relu(mm(x1, w_fc2a) + c2_rows + b_fc2)
    out = mm(h2, w_fc3) + b_fc3
    return out.reshape(B, N, N)


if __name__ == "__main__":
    N, U = 8, 32  # n_numbers, n_units
    key = jax.random.PRNGKey(0)
    k_param, k_x1, k_x2 = jax.random.split(key, 3)
    params = init_params(k_param, N, U)

    # Small case (single grid step).
    x_small = jax.random.uniform(k_x1, (2, N), jnp.float32)
    out_small = jax.block_until_ready(
        sorting_network_with_deepset_context(x_small, params,
                                             n_numbers=N, n_units=U))
    ref_small = reference_forward(x_small, params, N, U)
    assert out_small.shape == (2, N, N)
    assert jnp.allclose(out_small, ref_small, atol=1e-3, rtol=1e-3), \
        "mismatch vs JAX reference (small batch)"

    # Larger case exercising multi-step grid + batch padding / slicing.
    x_big = jax.random.uniform(k_x2, (40, N), jnp.float32)
    out_big = jax.block_until_ready(
        sorting_network_with_deepset_context(x_big, params,
                                             n_numbers=N, n_units=U))
    ref_big = reference_forward(x_big, params, N, U)
    assert out_big.shape == (40, N, N)
    assert jnp.allclose(out_big, ref_big, atol=1e-3, rtol=1e-3), \
        "mismatch vs JAX reference (multi-tile batch)"

    print("KERNEL_OK")
</pallas_src>

<mosaic_0001>
module attributes {stable_mosaic.version = 11 : i64} {
  func.func @_sort_ctx_kernel(%arg0: i32, %arg1: memref<8x8xf32, #tpu.memory_space<vmem>>, %arg2: memref<9x256xf32, #tpu.memory_space<vmem>>, %arg3: memref<256x256xbf16, #tpu.memory_space<vmem>>, %arg4: memref<32x32xbf16, #tpu.memory_space<vmem>>, %arg5: memref<32x32xbf16, #tpu.memory_space<vmem>>, %arg6: memref<256x256xbf16, #tpu.memory_space<vmem>>, %arg7: memref<32x256xbf16, #tpu.memory_space<vmem>>, %arg8: memref<256x64xbf16, #tpu.memory_space<vmem>>, %arg9: memref<8x64xf32, #tpu.memory_space<vmem>>) attributes {dimension_semantics = [#tpu.dimension_semantics<parallel>], iteration_bounds = array<i64: 1>, scalar_prefetch = 0 : i64, scratch_operands = 0 : i64, tpu.core_type = #tpu.core_type<tc>, window_params = [{transform_indices = @transform_0, window_bounds = array<i64: 8, 8>}, {pipeline_mode = #tpu.pipeline_mode<synchronous>, transform_indices = @transform_1, window_bounds = array<i64: 9, 256>}, {pipeline_mode = #tpu.pipeline_mode<synchronous>, transform_indices = @transform_2, window_bounds = array<i64: 256, 256>}, {pipeline_mode = #tpu.pipeline_mode<synchronous>, transform_indices = @transform_3, window_bounds = array<i64: 32, 32>}, {pipeline_mode = #tpu.pipeline_mode<synchronous>, transform_indices = @transform_4, window_bounds = array<i64: 32, 32>}, {pipeline_mode = #tpu.pipeline_mode<synchronous>, transform_indices = @transform_5, window_bounds = array<i64: 256, 256>}, {pipeline_mode = #tpu.pipeline_mode<synchronous>, transform_indices = @transform_6, window_bounds = array<i64: 32, 256>}, {pipeline_mode = #tpu.pipeline_mode<synchronous>, transform_indices = @transform_7, window_bounds = array<i64: 256, 64>}, {transform_indices = @transform_8, window_bounds = array<i64: 8, 64>}]} {
    %c0 = arith.constant 0 : index
    %c0_0 = arith.constant 0 : index
    %0 = vector.load %arg1[%c0, %c0_0] : memref<8x8xf32, #tpu.memory_space<vmem>>, vector<8x8xf32>
    %c0_1 = arith.constant 0 : index
    %c0_2 = arith.constant 0 : index
    %1 = vector.load %arg2[%c0_1, %c0_2] : memref<9x256xf32, #tpu.memory_space<vmem>>, vector<9x256xf32>
    %2 = vector.extract_strided_slice %1 {offsets = [0, 0], sizes = [1, 256], strides = [1, 1]} : vector<9x256xf32> to vector<1x256xf32>
    %3 = vector.extract_strided_slice %1 {offsets = [1, 0], sizes = [1, 256], strides = [1, 1]} : vector<9x256xf32> to vector<1x256xf32>
    %4 = vector.extract_strided_slice %1 {offsets = [2, 0], sizes = [1, 256], strides = [1, 1]} : vector<9x256xf32> to vector<1x256xf32>
    %5 = vector.extract_strided_slice %1 {offsets = [3, 0], sizes = [1, 256], strides = [1, 1]} : vector<9x256xf32> to vector<1x256xf32>
    %6 = vector.extract_strided_slice %1 {offsets = [4, 0], sizes = [1, 256], strides = [1, 1]} : vector<9x256xf32> to vector<1x256xf32>
    %7 = vector.extract_strided_slice %1 {offsets = [5, 0], sizes = [1, 256], strides = [1, 1]} : vector<9x256xf32> to vector<1x256xf32>
    %8 = vector.extract_strided_slice %1 {offsets = [6, 0], sizes = [1, 32], strides = [1, 1]} : vector<9x256xf32> to vector<1x32xf32>
    %9 = vector.extract_strided_slice %1 {offsets = [7, 0], sizes = [1, 32], strides = [1, 1]} : vector<9x256xf32> to vector<1x32xf32>
    %10 = vector.extract_strided_slice %1 {offsets = [8, 0], sizes = [1, 64], strides = [1, 1]} : vector<9x256xf32> to vector<1x64xf32>
    %11 = vector.extract_strided_slice %0 {offsets = [0, 0], sizes = [8, 1], strides = [1, 1]} : vector<8x8xf32> to vector<8x1xf32>
    %12 = vector.shape_cast %11 : vector<8x1xf32> to vector<8x1xf32>
    %13 = vector.broadcast %12 : vector<8x1xf32> to vector<8x32xf32>
    %14 = vector.extract_strided_slice %0 {offsets = [0, 1], sizes = [8, 1], strides = [1, 1]} : vector<8x8xf32> to vector<8x1xf32>
    %15 = vector.shape_cast %14 : vector<8x1xf32> to vector<8x1xf32>
    %16 = vector.broadcast %15 : vector<8x1xf32> to vector<8x32xf32>
    %17 = vector.extract_strided_slice %0 {offsets = [0, 2], sizes = [8, 1], strides = [1, 1]} : vector<8x8xf32> to vector<8x1xf32>
    %18 = vector.shape_cast %17 : vector<8x1xf32> to vector<8x1xf32>
    %19 = vector.broadcast %18 : vector<8x1xf32> to vector<8x32xf32>
    %20 = vector.extract_strided_slice %0 {offsets = [0, 3], sizes = [8, 1], strides = [1, 1]} : vector<8x8xf32> to vector<8x1xf32>
    %21 = vector.shape_cast %20 : vector<8x1xf32> to vector<8x1xf32>
    %22 = vector.broadcast %21 : vector<8x1xf32> to vector<8x32xf32>
    %23 = vector.extract_strided_slice %0 {offsets = [0, 4], sizes = [8, 1], strides = [1, 1]} : vector<8x8xf32> to vector<8x1xf32>
    %24 = vector.shape_cast %23 : vector<8x1xf32> to vector<8x1xf32>
    %25 = vector.broadcast %24 : vector<8x1xf32> to vector<8x32xf32>
    %26 = vector.extract_strided_slice %0 {offsets = [0, 5], sizes = [8, 1], strides = [1, 1]} : vector<8x8xf32> to vector<8x1xf32>
    %27 = vector.shape_cast %26 : vector<8x1xf32> to vector<8x1xf32>
    %28 = vector.broadcast %27 : vector<8x1xf32> to vector<8x32xf32>
    %29 = vector.extract_strided_slice %0 {offsets = [0, 6], sizes = [8, 1], strides = [1, 1]} : vector<8x8xf32> to vector<8x1xf32>
    %30 = vector.shape_cast %29 : vector<8x1xf32> to vector<8x1xf32>
    %31 = vector.broadcast %30 : vector<8x1xf32> to vector<8x32xf32>
    %32 = vector.extract_strided_slice %0 {offsets = [0, 7], sizes = [8, 1], strides = [1, 1]} : vector<8x8xf32> to vector<8x1xf32>
    %33 = vector.shape_cast %32 : vector<8x1xf32> to vector<8x1xf32>
    %34 = vector.broadcast %33 : vector<8x1xf32> to vector<8x32xf32>
    %35 = tpu.concatenate %13, %16, %19, %22, %25, %28, %31, %34 in 1 : vector<8x32xf32>, vector<8x32xf32>, vector<8x32xf32>, vector<8x32xf32>, vector<8x32xf32>, vector<8x32xf32>, vector<8x32xf32>, vector<8x32xf32> -> vector<8x256xf32>
    %36 = vector.broadcast %2 : vector<1x256xf32> to vector<8x256xf32>
    %37 = arith.mulf %35, %36 : vector<8x256xf32>
    %38 = vector.broadcast %3 : vector<1x256xf32> to vector<8x256xf32>
    %39 = arith.addf %37, %38 : vector<8x256xf32>
    %cst = arith.constant 0.000000e+00 : f32
    %40 = vector.broadcast %cst : f32 to vector<8x256xf32>
    %41 = arith.maximumf %39, %40 : vector<8x256xf32>
    %42 = vector.broadcast %4 : vector<1x256xf32> to vector<8x256xf32>
    %43 = arith.mulf %35, %42 : vector<8x256xf32>
    %44 = vector.broadcast %5 : vector<1x256xf32> to vector<8x256xf32>
    %45 = arith.addf %43, %44 : vector<8x256xf32>
    %cst_3 = arith.constant 0.000000e+00 : f32
    %46 = vector.broadcast %cst_3 : f32 to vector<8x256xf32>
    %47 = arith.maximumf %45, %46 : vector<8x256xf32>
    %48 = arith.truncf %41 : vector<8x256xf32> to vector<8x256xbf16>
    %c0_4 = arith.constant 0 : index
    %c0_5 = arith.constant 0 : index
    %49 = vector.load %arg3[%c0_4, %c0_5] : memref<256x256xbf16, #tpu.memory_space<vmem>>, vector<256x256xbf16>
    %cst_6 = arith.constant dense<0.000000e+00> : vector<8x256xf32>
    %50 = tpu.matmul %48, %49, %cst_6 {dimension_numbers = #tpu.dot_dimension_numbers<[1], [0], [0], [1], [0, 0, 1, 1], [], []>} : vector<8x256xbf16>, vector<256x256xbf16>, vector<8x256xf32> -> vector<8x256xf32>
    %51 = vector.broadcast %6 : vector<1x256xf32> to vector<8x256xf32>
    %52 = arith.addf %50, %51 : vector<8x256xf32>
    %cst_7 = arith.constant 0.000000e+00 : f32
    %53 = vector.broadcast %cst_7 : f32 to vector<8x256xf32>
    %54 = arith.maximumf %52, %53 : vector<8x256xf32>
    %55 = vector.extract_strided_slice %54 {offsets = [0, 0], sizes = [8, 32], strides = [1, 1]} : vector<8x256xf32> to vector<8x32xf32>
    %56 = vector.extract_strided_slice %54 {offsets = [0, 32], sizes = [8, 32], strides = [1, 1]} : vector<8x256xf32> to vector<8x32xf32>
    %57 = arith.addf %55, %56 : vector<8x32xf32>
    %58 = vector.extract_strided_slice %54 {offsets = [0, 64], sizes = [8, 32], strides = [1, 1]} : vector<8x256xf32> to vector<8x32xf32>
    %59 = arith.addf %57, %58 : vector<8x32xf32>
    %60 = vector.extract_strided_slice %54 {offsets = [0, 96], sizes = [8, 32], strides = [1, 1]} : vector<8x256xf32> to vector<8x32xf32>
    %61 = arith.addf %59, %60 : vector<8x32xf32>
    %62 = vector.extract_strided_slice %54 {offsets = [0, 128], sizes = [8, 32], strides = [1, 1]} : vector<8x256xf32> to vector<8x32xf32>
    %63 = arith.addf %61, %62 : vector<8x32xf32>
    %64 = vector.extract_strided_slice %54 {offsets = [0, 160], sizes = [8, 32], strides = [1, 1]} : vector<8x256xf32> to vector<8x32xf32>
    %65 = arith.addf %63, %64 : vector<8x32xf32>
    %66 = vector.extract_strided_slice %54 {offsets = [0, 192], sizes = [8, 32], strides = [1, 1]} : vector<8x256xf32> to vector<8x32xf32>
    %67 = arith.addf %65, %66 : vector<8x32xf32>
    %68 = vector.extract_strided_slice %54 {offsets = [0, 224], sizes = [8, 32], strides = [1, 1]} : vector<8x256xf32> to vector<8x32xf32>
    %69 = arith.addf %67, %68 : vector<8x32xf32>
    %70 = arith.truncf %69 : vector<8x32xf32> to vector<8x32xbf16>
    %c0_8 = arith.constant 0 : index
    %c0_9 = arith.constant 0 : index
    %71 = vector.load %arg4[%c0_8, %c0_9] : memref<32x32xbf16, #tpu.memory_space<vmem>>, vector<32x32xbf16>
    %cst_10 = arith.constant dense<0.000000e+00> : vector<8x32xf32>
    %72 = tpu.matmul %70, %71, %cst_10 {dimension_numbers = #tpu.dot_dimension_numbers<[1], [0], [0], [1], [0, 0, 1, 1], [], []>} : vector<8x32xbf16>, vector<32x32xbf16>, vector<8x32xf32> -> vector<8x32xf32>
    %73 = vector.broadcast %8 : vector<1x32xf32> to vector<8x32xf32>
    %74 = arith.addf %72, %73 : vector<8x32xf32>
    %cst_11 = arith.constant 0.000000e+00 : f32
    %75 = vector.broadcast %cst_11 : f32 to vector<8x32xf32>
    %76 = arith.maximumf %74, %75 : vector<8x32xf32>
    %77 = arith.truncf %76 : vector<8x32xf32> to vector<8x32xbf16>
    %c0_12 = arith.constant 0 : index
    %c0_13 = arith.constant 0 : index
    %78 = vector.load %arg5[%c0_12, %c0_13] : memref<32x32xbf16, #tpu.memory_space<vmem>>, vector<32x32xbf16>
    %cst_14 = arith.constant dense<0.000000e+00> : vector<8x32xf32>
    %79 = tpu.matmul %77, %78, %cst_14 {dimension_numbers = #tpu.dot_dimension_numbers<[1], [0], [0], [1], [0, 0, 1, 1], [], []>} : vector<8x32xbf16>, vector<32x32xbf16>, vector<8x32xf32> -> vector<8x32xf32>
    %80 = vector.broadcast %9 : vector<1x32xf32> to vector<8x32xf32>
    %81 = arith.addf %79, %80 : vector<8x32xf32>
    %cst_15 = arith.constant 0.000000e+00 : f32
    %82 = vector.broadcast %cst_15 : f32 to vector<8x32xf32>
    %83 = arith.maximumf %81, %82 : vector<8x32xf32>
    %84 = arith.truncf %47 : vector<8x256xf32> to vector<8x256xbf16>
    %c0_16 = arith.constant 0 : index
    %c0_17 = arith.constant 0 : index
    %85 = vector.load %arg6[%c0_16, %c0_17] : memref<256x256xbf16, #tpu.memory_space<vmem>>, vector<256x256xbf16>
    %cst_18 = arith.constant dense<0.000000e+00> : vector<8x256xf32>
    %86 = tpu.matmul %84, %85, %cst_18 {dimension_numbers = #tpu.dot_dimension_numbers<[1], [0], [0], [1], [0, 0, 1, 1], [], []>} : vector<8x256xbf16>, vector<256x256xbf16>, vector<8x256xf32> -> vector<8x256xf32>
    %87 = arith.truncf %83 : vector<8x32xf32> to vector<8x32xbf16>
    %c0_19 = arith.constant 0 : index
    %c0_20 = arith.constant 0 : index
    %88 = vector.load %arg7[%c0_19, %c0_20] : memref<32x256xbf16, #tpu.memory_space<vmem>>, vector<32x256xbf16>
    %cst_21 = arith.constant dense<0.000000e+00> : vector<8x256xf32>
    %89 = tpu.matmul %87, %88, %cst_21 {dimension_numbers = #tpu.dot_dimension_numbers<[1], [0], [0], [1], [0, 0, 1, 1], [], []>} : vector<8x32xbf16>, vector<32x256xbf16>, vector<8x256xf32> -> vector<8x256xf32>
    %90 = arith.addf %86, %89 : vector<8x256xf32>
    %91 = vector.broadcast %7 : vector<1x256xf32> to vector<8x256xf32>
    %92 = arith.addf %90, %91 : vector<8x256xf32>
    %cst_22 = arith.constant 0.000000e+00 : f32
    %93 = vector.broadcast %cst_22 : f32 to vector<8x256xf32>
    %94 = arith.maximumf %92, %93 : vector<8x256xf32>
    %95 = arith.truncf %94 : vector<8x256xf32> to vector<8x256xbf16>
    %c0_23 = arith.constant 0 : index
    %c0_24 = arith.constant 0 : index
    %96 = vector.load %arg8[%c0_23, %c0_24] : memref<256x64xbf16, #tpu.memory_space<vmem>>, vector<256x64xbf16>
    %cst_25 = arith.constant dense<0.000000e+00> : vector<8x64xf32>
    %97 = tpu.matmul %95, %96, %cst_25 {dimension_numbers = #tpu.dot_dimension_numbers<[1], [0], [0], [1], [0, 0, 1, 1], [], []>} : vector<8x256xbf16>, vector<256x64xbf16>, vector<8x64xf32> -> vector<8x64xf32>
    %98 = vector.broadcast %10 : vector<1x64xf32> to vector<8x64xf32>
    %99 = arith.addf %97, %98 : vector<8x64xf32>
    %c0_26 = arith.constant 0 : index
    %c0_27 = arith.constant 0 : index
    %100 = vector.load %arg9[%c0_26, %c0_27] : memref<8x64xf32, #tpu.memory_space<vmem>>, vector<8x64xf32>
    tpu.vector_store %arg9[%c0_26, %c0_27], %99 {strides = array<i32>} : memref<8x64xf32, #tpu.memory_space<vmem>>, vector<8x64xf32>,
    return
  }
  func.func @transform_0(%arg0: i32) -> (i32, i32) {
    %c0_i32 = arith.constant 0 : i32
    %c0_i32_0 = arith.constant 0 : i32
    return %arg0, %c0_i32 : i32, i32
  }
  func.func @transform_1(%arg0: i32) -> (i32, i32) {
    %c0_i32 = arith.constant 0 : i32
    %c0_i32_0 = arith.constant 0 : i32
    %c0_i32_1 = arith.constant 0 : i32
    return %c0_i32, %c0_i32_0 : i32, i32
  }
  func.func @transform_2(%arg0: i32) -> (i32, i32) {
    %c0_i32 = arith.constant 0 : i32
    %c0_i32_0 = arith.constant 0 : i32
    %c0_i32_1 = arith.constant 0 : i32
    return %c0_i32, %c0_i32_0 : i32, i32
  }
  func.func @transform_3(%arg0: i32) -> (i32, i32) {
    %c0_i32 = arith.constant 0 : i32
    %c0_i32_0 = arith.constant 0 : i32
    %c0_i32_1 = arith.constant 0 : i32
    return %c0_i32, %c0_i32_0 : i32, i32
  }
  func.func @transform_4(%arg0: i32) -> (i32, i32) {
    %c0_i32 = arith.constant 0 : i32
    %c0_i32_0 = arith.constant 0 : i32
    %c0_i32_1 = arith.constant 0 : i32
    return %c0_i32, %c0_i32_0 : i32, i32
  }
  func.func @transform_5(%arg0: i32) -> (i32, i32) {
    %c0_i32 = arith.constant 0 : i32
    %c0_i32_0 = arith.constant 0 : i32
    %c0_i32_1 = arith.constant 0 : i32
    return %c0_i32, %c0_i32_0 : i32, i32
  }
  func.func @transform_6(%arg0: i32) -> (i32, i32) {
    %c0_i32 = arith.constant 0 : i32
    %c0_i32_0 = arith.constant 0 : i32
    %c0_i32_1 = arith.constant 0 : i32
    return %c0_i32, %c0_i32_0 : i32, i32
  }
  func.func @transform_7(%arg0: i32) -> (i32, i32) {
    %c0_i32 = arith.constant 0 : i32
    %c0_i32_0 = arith.constant 0 : i32
    %c0_i32_1 = arith.constant 0 : i32
    return %c0_i32, %c0_i32_0 : i32, i32
  }
  func.func @transform_8(%arg0: i32) -> (i32, i32) {
    %c0_i32 = arith.constant 0 : i32
    %c0_i32_0 = arith.constant 0 : i32
    return %arg0, %c0_i32 : i32, i32
  }
}

</mosaic_0001>

<llo_original>
// kernel: tpu_custom_call.1
$region0: #{tpu_custom_call.1}
  #allocation0 [shape = 'u32[]', space=smem, size = 0x4, offset = 0x4, fixed_abs, tag = 'smem constant byte address 0x4 - core index']
  #allocation1 [shape = 'u32[144,128]{1,0:T(1,128)}', space=vmem, size = 0x12000, scoped, tag = 'internal scratch']
  %s0 = inlined_call_operand.vmem [shape: f32[8,8], index: 0, kind: input, shape index: {}]
  %s1 = inlined_call_operand.vmem [shape: f32[9,256], index: 1, kind: input, shape index: {}]
  %s2 = inlined_call_operand.hbm [shape: bf16[256,256], index: 2, kind: input, shape index: {}]
  %s3 = inlined_call_operand.vmem [shape: bf16[32,32], index: 3, kind: input, shape index: {}]
  %s4 = inlined_call_operand.vmem [shape: bf16[32,32], index: 4, kind: input, shape index: {}]
  %s5 = inlined_call_operand.hbm [shape: bf16[256,256], index: 5, kind: input, shape index: {}]
  %s6 = inlined_call_operand.vmem [shape: bf16[32,256], index: 6, kind: input, shape index: {}]
  %s7 = inlined_call_operand.vmem [shape: bf16[256,64], index: 7, kind: input, shape index: {}]
  %s8 = inlined_call_operand.hbm [shape: f32[8,64], index: 8, kind: output, shape index: {}]
  %s9 = sld [smem:[#allocation0]]
  $region50: #{tpu_custom_call.1} parent=0
    _
  %s11 = ssub.s32 1, %s9
  %s12 = scalar_select 0, %s11, %s9
  $region1: #{tpu_custom_call.1} parent=0
    #allocation2 [shape = 'u8[131072]{0}', space=vmem, size = 0x20000, scoped, tag = 'input window, operand 2, single buffered']
    #allocation3 [shape = 's32[1]{0}', space=sflag, size = 0x4, scoped, tag = 'scoped memory for tpu_custom_call.1']
    #allocation4 [shape = 's32[1]{0}', space=sflag, size = 0x4, scoped, tag = 'scoped memory for tpu_custom_call.1']
    #allocation5 [shape = 'u8[131072]{0}', space=vmem, size = 0x20000, scoped, tag = 'input window, operand 5, single buffered']
    #allocation6 [shape = 's32[1]{0}', space=sflag, size = 0x4, scoped, tag = 'scoped memory for tpu_custom_call.1']
    #allocation7 [shape = 'u8[4096]{0}', space=vmem, size = 0x1000, scoped, tag = 'output window, operand 0, single buffered']
    %13 = vsyncpa [#allocation3], 0
    %14 = vsyncpa [#allocation6], 0
    %15 = vsyncpa [#allocation4], 0
    // Predicated region
    $region2: #{tpu_custom_call.1} parent=1 // pred_check
      _
    $region3: #{tpu_custom_call.1} parent=1 // pred_check_branch
      %17 = sbr.rel (0) target = $region5
    $region4: #{tpu_custom_call.1} parent=1 // pred_region
      _
    $region5: #{tpu_custom_call.1} parent=1 // pred_fallthru
      _
    // Predicated region
    $region6: #{tpu_custom_call.1} parent=1 // pred_check
      _
    $region7: #{tpu_custom_call.1} parent=1 // pred_check_branch
      %19 = sbr.rel (0) target = $region9
    $region8: #{tpu_custom_call.1} parent=1 // pred_region
      _
    $region9: #{tpu_custom_call.1} parent=1 // pred_fallthru
      _
    // Predicated region
    $region10: #{tpu_custom_call.1} parent=1 // pred_check
      _
    $region11: #{tpu_custom_call.1} parent=1 // pred_check_branch
      %21 = sbr.rel (0) target = $region13
    $region12: #{tpu_custom_call.1} parent=1 // pred_region
      %s23 = ssub.s32 4096, 4096
      %24 = vsyncadd [#allocation3], %s23
      %s25 = sshll.u32 [#allocation2], 4
      %s26 = int_to_ptr.vmem [resolvable:$true] %s25
      %31 = dma.hbm_to_vmem [thread:$0]  %s2, 4096, %s26, [#allocation3], 128, 128, 8
    $region13: #{tpu_custom_call.1} parent=1 // pred_fallthru
      _
    // Predicated region
    $region14: #{tpu_custom_call.1} parent=1 // pred_check
      _
    $region15: #{tpu_custom_call.1} parent=1 // pred_check_branch
      %33 = sbr.rel (0) target = $region17
    $region16: #{tpu_custom_call.1} parent=1 // pred_region
      _
    $region17: #{tpu_custom_call.1} parent=1 // pred_fallthru
      _
    // Predicated region
    $region18: #{tpu_custom_call.1} parent=1 // pred_check
      _
    $region19: #{tpu_custom_call.1} parent=1 // pred_check_branch
      %35 = sbr.rel (0) target = $region21
    $region20: #{tpu_custom_call.1} parent=1 // pred_region
      _
    $region21: #{tpu_custom_call.1} parent=1 // pred_fallthru
      _
    // Predicated region
    $region22: #{tpu_custom_call.1} parent=1 // pred_check
      _
    $region23: #{tpu_custom_call.1} parent=1 // pred_check_branch
      %37 = sbr.rel (0) target = $region25
    $region24: #{tpu_custom_call.1} parent=1 // pred_region
      %s39 = ssub.s32 4096, 4096
      %40 = vsyncadd [#allocation6], %s39
      %s41 = sshll.u32 [#allocation5], 4
      %s42 = int_to_ptr.vmem [resolvable:$true] %s41
      %47 = dma.hbm_to_vmem [thread:$0]  %s5, 4096, %s42, [#allocation6], 128, 128, 8
    $region25: #{tpu_custom_call.1} parent=1 // pred_fallthru
      _
    // Predicated region
    $region26: #{tpu_custom_call.1} parent=1 // pred_check
      _
    $region27: #{tpu_custom_call.1} parent=1 // pred_check_branch
      %49 = sbr.rel (0) target = $region29
    $region28: #{tpu_custom_call.1} parent=1 // pred_region
      _
    $region29: #{tpu_custom_call.1} parent=1 // pred_fallthru
      _
    // Predicated region
    $region30: #{tpu_custom_call.1} parent=1 // pred_check
      _
    $region31: #{tpu_custom_call.1} parent=1 // pred_check_branch
      %51 = sbr.rel (0) target = $region33
    $region32: #{tpu_custom_call.1} parent=1 // pred_region
      _
    $region33: #{tpu_custom_call.1} parent=1 // pred_fallthru
      _
    // Predicated region
    $region34: #{tpu_custom_call.1} parent=1 // pred_check
      _
    $region35: #{tpu_custom_call.1} parent=1 // pred_check_branch
      %53 = sbr.rel (0) target = $region37
    $region36: #{tpu_custom_call.1} parent=1 // pred_region
      %54 = dma.done [#allocation3], 4096
    $region37: #{tpu_custom_call.1} parent=1 // pred_fallthru
      _
    // Predicated region
    $region38: #{tpu_custom_call.1} parent=1 // pred_check
      _
    $region39: #{tpu_custom_call.1} parent=1 // pred_check_branch
      %56 = sbr.rel (0) target = $region41
    $region40: #{tpu_custom_call.1} parent=1 // pred_region
      %57 = dma.done [#allocation6], 4096
    $region41: #{tpu_custom_call.1} parent=1 // pred_fallthru
      _
    %v59 = vld [vmem:[%s0] sm:$0xff]
    %v60 = vld [vmem:[%s1] sm:$0xff]
    %v61 = vld [vmem:[%s1 + $0x8] sm:$0xff]
    %v62 = vld [vmem:[%s1 + $0x10] sm:$0x1]
    %64 = vset.pattern.permute.xlu0 0
    %65 = vperm.xlu0 %64, %v59
    %v66 = vpop.permute.xlu0 %65
    %68 = vset.pattern.permute.xlu0 1
    %69 = vperm.xlu0 %68, %v59
    %v70 = vpop.permute.xlu0 %69
    %72 = vset.pattern.permute.xlu0 2
    %73 = vperm.xlu0 %72, %v59
    %v74 = vpop.permute.xlu0 %73
    %76 = vset.pattern.permute.xlu0 3
    %77 = vperm.xlu0 %76, %v59
    %v78 = vpop.permute.xlu0 %77
    %80 = vset.pattern.permute.xlu0 4
    %81 = vperm.xlu0 %80, %v59
    %v82 = vpop.permute.xlu0 %81
    %84 = vset.pattern.permute.xlu0 5
    %85 = vperm.xlu0 %84, %v59
    %v86 = vpop.permute.xlu0 %85
    %88 = vset.pattern.permute.xlu0 6
    %89 = vperm.xlu0 %88, %v59
    %v90 = vpop.permute.xlu0 %89
    %92 = vset.pattern.permute.xlu0 7
    %93 = vperm.xlu0 %92, %v59
    %v94 = vpop.permute.xlu0 %93
    %vm96 = vcmask 261120
    %v97 = vsel %vm96, %v66, %v70
    %vm98 = vcmask 523264
    %v99 = vsel %vm98, %v97, %v74
    %vm100 = vcmask 785408
    %v101 = vsel %vm100, %v99, %v78
    %v102 = vsel %vm96, %v82, %v86
    %v103 = vsel %vm98, %v102, %v90
    %v104 = vsel %vm100, %v103, %v94
    %v105 = vlaneseq
    %v106 = vshrl.u32 %v105, 7
    %v107 = vsub.s32 0, %v106
    %v108 = vrot.slane %v60, %v107
    %v109 = vlaneseq
    %v110 = vshrl.u32 %v109, 7
    %v111 = vsub.s32 0, %v110
    %v112 = vrot.slane %v61, %v111
    %v113 = vmul.f32 %v101, %v108
    %v114 = vmul.f32 %v104, %v112
    %v115 = vlaneseq
    %v116 = vshrl.u32 %v115, 7
    %v117 = vsub.s32 1, %v116
    %v118 = vrot.slane %v60, %v117
    %v119 = vlaneseq
    %v120 = vshrl.u32 %v119, 7
    %v121 = vsub.s32 1, %v120
    %v122 = vrot.slane %v61, %v121
    %v123 = vadd.f32 %v113, %v118
    %v124 = vadd.f32 %v114, %v122
    %v125 = vmax.f32 %v123, 0.0
    %v126 = vmax.f32 %v124, 0.0
    %v127 = vlaneseq
    %v128 = vshrl.u32 %v127, 7
    %v129 = vsub.s32 2, %v128
    %v130 = vrot.slane %v60, %v129
    %v131 = vlaneseq
    %v132 = vshrl.u32 %v131, 7
    %v133 = vsub.s32 2, %v132
    %v134 = vrot.slane %v61, %v133
    %v135 = vmul.f32 %v101, %v130
    %v136 = vmul.f32 %v104, %v134
    %v137 = vlaneseq
    %v138 = vshrl.u32 %v137, 7
    %v139 = vsub.s32 3, %v138
    %v140 = vrot.slane %v60, %v139
    %v141 = vlaneseq
    %v142 = vshrl.u32 %v141, 7
    %v143 = vsub.s32 3, %v142
    %v144 = vrot.slane %v61, %v143
    %v145 = vadd.f32 %v135, %v140
    %v146 = vadd.f32 %v136, %v144
    %v147 = vmax.f32 %v145, 0.0
    %v148 = vmax.f32 %v146, 0.0
    %v149 = vpack.c.bf16 %v125, %v125
    %v150 = vpack.c.bf16 %v126, %v126
    %v151 = vld [vmem:[#allocation2] sm:$0xff]
    %v152 = vld [vmem:[#allocation2 + $0x8] sm:$0xff]
    %v153 = vld [vmem:[#allocation2 + $0x10] sm:$0xff]
    %v154 = vld [vmem:[#allocation2 + $0x18] sm:$0xff]
    %v155 = vld [vmem:[#allocation2 + $0x20] sm:$0xff]
    %v156 = vld [vmem:[#allocation2 + $0x28] sm:$0xff]
    %v157 = vld [vmem:[#allocation2 + $0x30] sm:$0xff]
    %v158 = vld [vmem:[#allocation2 + $0x38] sm:$0xff]
    %v159 = vld [vmem:[#allocation2 + $0x40] sm:$0xff]
    %v160 = vld [vmem:[#allocation2 + $0x48] sm:$0xff]
    %v161 = vld [vmem:[#allocation2 + $0x50] sm:$0xff]
    %v162 = vld [vmem:[#allocation2 + $0x58] sm:$0xff]
    %v163 = vld [vmem:[#allocation2 + $0x60] sm:$0xff]
    %v164 = vld [vmem:[#allocation2 + $0x68] sm:$0xff]
    %v165 = vld [vmem:[#allocation2 + $0x70] sm:$0xff]
    %v166 = vld [vmem:[#allocation2 + $0x78] sm:$0xff]
    %v167 = vld [vmem:[#allocation2 + $0x80] sm:$0xff]
    %v168 = vld [vmem:[#allocation2 + $0x88] sm:$0xff]
    %v169 = vld [vmem:[#allocation2 + $0x90] sm:$0xff]
    %v170 = vld [vmem:[#allocation2 + $0x98] sm:$0xff]
    %v171 = vld [vmem:[#allocation2 + $0xa0] sm:$0xff]
    %v172 = vld [vmem:[#allocation2 + $0xa8] sm:$0xff]
    %v173 = vld [vmem:[#allocation2 + $0xb0] sm:$0xff]
    %v174 = vld [vmem:[#allocation2 + $0xb8] sm:$0xff]
    %v175 = vld [vmem:[#allocation2 + $0xc0] sm:$0xff]
    %v176 = vld [vmem:[#allocation2 + $0xc8] sm:$0xff]
    %v177 = vld [vmem:[#allocation2 + $0xd0] sm:$0xff]
    %v178 = vld [vmem:[#allocation2 + $0xd8] sm:$0xff]
    %v179 = vld [vmem:[#allocation2 + $0xe0] sm:$0xff]
    %v180 = vld [vmem:[#allocation2 + $0xe8] sm:$0xff]
    %v181 = vld [vmem:[#allocation2 + $0xf0] sm:$0xff]
    %v182 = vld [vmem:[#allocation2 + $0xf8] sm:$0xff]
    %v183 = vlaneseq
    %v184 = vshrl.u32 %v183, 7
    %v185 = vsub.s32 4, %v184
    %v186 = vrot.slane %v60, %v185
    %v187 = vlaneseq
    %v188 = vshrl.u32 %v187, 7
    %v189 = vsub.s32 4, %v188
    %v190 = vrot.slane %v61, %v189
    %v223 = vunpack.c.l.b16 %v151
    %v224 = vunpack.c.h.b16 %v151
    %v225 = vunpack.c.l.b16 %v152
    %v226 = vunpack.c.h.b16 %v152
    %v227 = vunpack.c.l.b16 %v153
    %v228 = vunpack.c.h.b16 %v153
    %v229 = vunpack.c.l.b16 %v154
    %v230 = vunpack.c.h.b16 %v154
    %v231 = vunpack.c.l.b16 %v155
    %v232 = vunpack.c.h.b16 %v155
    %v233 = vunpack.c.l.b16 %v156
    %v234 = vunpack.c.h.b16 %v156
    %v235 = vunpack.c.l.b16 %v157
    %v236 = vunpack.c.h.b16 %v157
    %v237 = vunpack.c.l.b16 %v158
    %v238 = vunpack.c.h.b16 %v158
    %v239 = vunpack.c.l.b16 %v159
    %v240 = vunpack.c.h.b16 %v159
    %v241 = vunpack.c.l.b16 %v160
    %v242 = vunpack.c.h.b16 %v160
    %v243 = vunpack.c.l.b16 %v161
    %v244 = vunpack.c.h.b16 %v161
    %v245 = vunpack.c.l.b16 %v162
    %v246 = vunpack.c.h.b16 %v162
    %v247 = vunpack.c.l.b16 %v163
    %v248 = vunpack.c.h.b16 %v163
    %v249 = vunpack.c.l.b16 %v164
    %v250 = vunpack.c.h.b16 %v164
    %v251 = vunpack.c.l.b16 %v165
    %v252 = vunpack.c.h.b16 %v165
    %v253 = vunpack.c.l.b16 %v166
    %v254 = vunpack.c.h.b16 %v166
    %v255 = vunpack.c.l.b16 %v167
    %v256 = vunpack.c.h.b16 %v167
    %v257 = vunpack.c.l.b16 %v168
    %v258 = vunpack.c.h.b16 %v168
    %v259 = vunpack.c.l.b16 %v169
    %v260 = vunpack.c.h.b16 %v169
    %v261 = vunpack.c.l.b16 %v170
    %v262 = vunpack.c.h.b16 %v170
    %v263 = vunpack.c.l.b16 %v171
    %v264 = vunpack.c.h.b16 %v171
    %v265 = vunpack.c.l.b16 %v172
    %v266 = vunpack.c.h.b16 %v172
    %v267 = vunpack.c.l.b16 %v173
    %v268 = vunpack.c.h.b16 %v173
    %v269 = vunpack.c.l.b16 %v174
    %v270 = vunpack.c.h.b16 %v174
    %v271 = vunpack.c.l.b16 %v175
    %v272 = vunpack.c.h.b16 %v175
    %v273 = vunpack.c.l.b16 %v176
    %v274 = vunpack.c.h.b16 %v176
    %v275 = vunpack.c.l.b16 %v177
    %v276 = vunpack.c.h.b16 %v177
    %v277 = vunpack.c.l.b16 %v178
    %v278 = vunpack.c.h.b16 %v178
    %v279 = vunpack.c.l.b16 %v179
    %v280 = vunpack.c.h.b16 %v179
    %v281 = vunpack.c.l.b16 %v180
    %v282 = vunpack.c.h.b16 %v180
    %v283 = vunpack.c.l.b16 %v181
    %v284 = vunpack.c.h.b16 %v181
    %v285 = vunpack.c.l.b16 %v182
    %v286 = vunpack.c.h.b16 %v182
    %v287 = vpack.c.b16 %v225, %v223
    %v288 = vpack.c.b16 %v226, %v224
    %v289 = vpack.c.b16 %v229, %v227
    %v290 = vpack.c.b16 %v230, %v228
    %v291 = vpack.c.b16 %v233, %v231
    %v292 = vpack.c.b16 %v234, %v232
    %v293 = vpack.c.b16 %v237, %v235
    %v294 = vpack.c.b16 %v238, %v236
    %v295 = vpack.c.b16 %v241, %v239
    %v296 = vpack.c.b16 %v242, %v240
    %v297 = vpack.c.b16 %v245, %v243
    %v298 = vpack.c.b16 %v246, %v244
    %v299 = vpack.c.b16 %v249, %v247
    %v300 = vpack.c.b16 %v250, %v248
    %v301 = vpack.c.b16 %v253, %v251
    %v302 = vpack.c.b16 %v254, %v252
    %v303 = vpack.c.b16 %v257, %v255
    %v304 = vpack.c.b16 %v258, %v256
    %v305 = vpack.c.b16 %v261, %v259
    %v306 = vpack.c.b16 %v262, %v260
    %v307 = vpack.c.b16 %v265, %v263
    %v308 = vpack.c.b16 %v266, %v264
    %v309 = vpack.c.b16 %v269, %v267
    %v310 = vpack.c.b16 %v270, %v268
    %v311 = vpack.c.b16 %v273, %v271
    %v312 = vpack.c.b16 %v274, %v272
    %v313 = vpack.c.b16 %v277, %v275
    %v314 = vpack.c.b16 %v278, %v276
    %v315 = vpack.c.b16 %v281, %v279
    %v316 = vpack.c.b16 %v282, %v280
    %v317 = vpack.c.b16 %v285, %v283
    %v318 = vpack.c.b16 %v286, %v284
    %351 = vmatprep.subr.bf16.mxu0 %v288
    %352 = vmatpush1.bf16.msra.mxu0 %v287
    %353 = vmatprep.subr.bf16.mxu0 %v290
    %354 = vmatpush1.bf16.msra.mxu0 %v289
    %355 = vmatprep.subr.bf16.mxu0 %v292
    %356 = vmatpush1.bf16.msra.mxu0 %v291
    %357 = vmatprep.subr.bf16.mxu0 %v294
    %358 = vmatpush1.bf16.msra.mxu0 %v293
    %359 = vmatprep.subr.bf16.mxu0 %v296
    %360 = vmatpush1.bf16.msra.mxu0 %v295
    %361 = vmatprep.subr.bf16.mxu0 %v298
    %362 = vmatpush1.bf16.msra.mxu0 %v297
    %363 = vmatprep.subr.bf16.mxu0 %v300
    %364 = vmatpush1.bf16.msra.mxu0 %v299
    %365 = vmatprep.subr.bf16.mxu0 %v302
    %366 = vmatpush1.bf16.msra.mxu0 %v301
    %367 = vmatprep.subr.bf16.mxu0 %v304
    %368 = vmatpush1.bf16.msra.mxu0 %v303
    %369 = vmatprep.subr.bf16.mxu0 %v306
    %370 = vmatpush1.bf16.msra.mxu0 %v305
    %371 = vmatprep.subr.bf16.mxu0 %v308
    %372 = vmatpush1.bf16.msra.mxu0 %v307
    %373 = vmatprep.subr.bf16.mxu0 %v310
    %374 = vmatpush1.bf16.msra.mxu0 %v309
    %375 = vmatprep.subr.bf16.mxu0 %v312
    %376 = vmatpush1.bf16.msra.mxu0 %v311
    %377 = vmatprep.subr.bf16.mxu0 %v314
    %378 = vmatpush1.bf16.msra.mxu0 %v313
    %379 = vmatprep.subr.bf16.mxu0 %v316
    %380 = vmatpush1.bf16.msra.mxu0 %v315
    %381 = vmatprep.subr.bf16.mxu0 %v318
    %382 = vmatpush1.bf16.msra.mxu0 %v317
    %383 = vmatprep.mubr.bf16.mxu0 %v150
    %384 = vmatmul.mubr.bf16.gmra.mrb[0].mxu0 %v149
    %v385 = vpop.f32.mrb[0].mxu0
    %v386 = vadd.f32 %v186, %v385
    %v387 = vpop.f32.mrb[0].mxu0
    %v388 = vadd.f32 %v190, %v387
    %v389 = vpop.f32.mrb[0].mxu0
    %v390 = vpop.f32.mrb[0].mxu0
    %391 = vdwg.mxu0
    %v392 = vmax.f32 %v386, 0.0
    %v393 = vmax.f32 %v388, 0.0
    %395 = vrot.lane.b32.xlu0 %v392, 96
    %v396 = vpop.permute.xlu0 %395
    %v398 = vadd.f32 %v392, %v396
    %399 = vrot.lane.b32.xlu0 %v392, 64
    %v400 = vpop.permute.xlu0 %399
    %v402 = vadd.f32 %v398, %v400
    %403 = vrot.lane.b32.xlu0 %v392, 32
    %v404 = vpop.permute.xlu0 %403
    %v406 = vadd.f32 %v402, %v404
    %v407 = vadd.f32 %v406, %v393
    %409 = vrot.lane.b32.xlu0 %v393, 96
    %v410 = vpop.permute.xlu0 %409
    %v412 = vadd.f32 %v407, %v410
    %413 = vrot.lane.b32.xlu0 %v393, 64
    %v414 = vpop.permute.xlu0 %413
    %v416 = vadd.f32 %v412, %v414
    %417 = vrot.lane.b32.xlu0 %v393, 32
    %v418 = vpop.permute.xlu0 %417
    %v420 = vadd.f32 %v416, %v418
    %v421 = vpack.c.bf16 %v420, %v420
    %v422 = vld [vmem:[%s3] sm:$0xf]
    %v423 = vld [vmem:[%s3 + $0x4] sm:$0xf]
    %v424 = vld [vmem:[%s3 + $0x8] sm:$0xf]
    %v425 = vld [vmem:[%s3 + $0xc] sm:$0xf]
    %v426 = vlaneseq
    %v427 = vshrl.u32 %v426, 7
    %v428 = vsub.s32 6, %v427
    %v429 = vrot.slane %v60, %v428
    %v434 = vunpack.c.l.b16 %v422
    %v435 = vunpack.c.l.b16 %v423
    %v436 = vunpack.c.l.b16 %v424
    %v437 = vunpack.c.l.b16 %v425
    %v438 = vpack.c.b16 %v435, %v434
    %v439 = vpack.c.b16 %v437, %v436
    %v443 = vsel %vm96, %v421, 0
    %445 = vmatprep.subr.bf16.mxu0 0
    %446 = vmatpush1.bf16.msra.mxu0 %v438
    %447 = vmatprep.subr.bf16.mxu0 0
    %448 = vmatpush1.bf16.msra.mxu0 %v439
    %449 = vmatprep.subr.bf16.mxu0 0
    %450 = vmatpush1.bf16.msra.mxu0 0
    %451 = vmatprep.subr.bf16.mxu0 0
    %452 = vmatpush1.bf16.msra.mxu0 0
    %453 = vmatprep.subr.bf16.mxu0 0
    %454 = vmatpush1.bf16.msra.mxu0 0
    %455 = vmatprep.subr.bf16.mxu0 0
    %456 = vmatpush1.bf16.msra.mxu0 0
    %457 = vmatprep.subr.bf16.mxu0 0
    %458 = vmatpush1.bf16.msra.mxu0 0
    %459 = vmatprep.subr.bf16.mxu0 0
    %460 = vmatpush1.bf16.msra.mxu0 0
    %461 = vmatprep.subr.bf16.mxu0 0
    %462 = vmatpush1.bf16.msra.mxu0 0
    %463 = vmatprep.subr.bf16.mxu0 0
    %464 = vmatpush1.bf16.msra.mxu0 0
    %465 = vmatprep.subr.bf16.mxu0 0
    %466 = vmatpush1.bf16.msra.mxu0 0
    %467 = vmatprep.subr.bf16.mxu0 0
    %468 = vmatpush1.bf16.msra.mxu0 0
    %469 = vmatprep.subr.bf16.mxu0 0
    %470 = vmatpush1.bf16.msra.mxu0 0
    %471 = vmatprep.subr.bf16.mxu0 0
    %472 = vmatpush1.bf16.msra.mxu0 0
    %473 = vmatprep.subr.bf16.mxu0 0
    %474 = vmatpush1.bf16.msra.mxu0 0
    %475 = vmatprep.subr.bf16.mxu0 0
    %476 = vmatpush1.bf16.msra.mxu0 0
    %477 = vmatprep.mubr.bf16.mxu0 0
    %478 = vmatmul.mubr.bf16.gmra.mrb[0].mxu0 %v443
    %v479 = vpop.f32.mrb[0].mxu0
    %v480 = vadd.f32 %v429, %v479
    %v481 = vpop.f32.mrb[0].mxu0
    %v482 = vpop.f32.mrb[0].mxu0
    %v483 = vpop.f32.mrb[0].mxu0
    %484 = vdwg.mxu0
    %v485 = vmax.f32 %v480, 0.0
    %v486 = vpack.c.bf16 %v485, %v485
    %v487 = vld [vmem:[%s4] sm:$0xf]
    %v488 = vld [vmem:[%s4 + $0x4] sm:$0xf]
    %v489 = vld [vmem:[%s4 + $0x8] sm:$0xf]
    %v490 = vld [vmem:[%s4 + $0xc] sm:$0xf]
    %v491 = vlaneseq
    %v492 = vshrl.u32 %v491, 7
    %v493 = vsub.s32 7, %v492
    %v494 = vrot.slane %v60, %v493
    %v499 = vunpack.c.l.b16 %v487
    %v500 = vunpack.c.l.b16 %v488
    %v501 = vunpack.c.l.b16 %v489
    %v502 = vunpack.c.l.b16 %v490
    %v503 = vpack.c.b16 %v500, %v499
    %v504 = vpack.c.b16 %v502, %v501
    %v508 = vsel %vm96, %v486, 0
    %510 = vmatprep.subr.bf16.mxu0 0
    %511 = vmatpush1.bf16.msra.mxu0 %v503
    %512 = vmatprep.subr.bf16.mxu0 0
    %513 = vmatpush1.bf16.msra.mxu0 %v504
    %514 = vmatprep.subr.bf16.mxu0 0
    %515 = vmatpush1.bf16.msra.mxu0 0
    %516 = vmatprep.subr.bf16.mxu0 0
    %517 = vmatpush1.bf16.msra.mxu0 0
    %518 = vmatprep.subr.bf16.mxu0 0
    %519 = vmatpush1.bf16.msra.mxu0 0
    %520 = vmatprep.subr.bf16.mxu0 0
    %521 = vmatpush1.bf16.msra.mxu0 0
    %522 = vmatprep.subr.bf16.mxu0 0
    %523 = vmatpush1.bf16.msra.mxu0 0
    %524 = vmatprep.subr.bf16.mxu0 0
    %525 = vmatpush1.bf16.msra.mxu0 0
    %526 = vmatprep.subr.bf16.mxu0 0
    %527 = vmatpush1.bf16.msra.mxu0 0
    %528 = vmatprep.subr.bf16.mxu0 0
    %529 = vmatpush1.bf16.msra.mxu0 0
    %530 = vmatprep.subr.bf16.mxu0 0
    %531 = vmatpush1.bf16.msra.mxu0 0
    %532 = vmatprep.subr.bf16.mxu0 0
    %533 = vmatpush1.bf16.msra.mxu0 0
    %534 = vmatprep.subr.bf16.mxu0 0
    %535 = vmatpush1.bf16.msra.mxu0 0
    %536 = vmatprep.subr.bf16.mxu0 0
    %537 = vmatpush1.bf16.msra.mxu0 0
    %538 = vmatprep.subr.bf16.mxu0 0
    %539 = vmatpush1.bf16.msra.mxu0 0
    %540 = vmatprep.subr.bf16.mxu0 0
    %541 = vmatpush1.bf16.msra.mxu0 0
    %542 = vmatprep.mubr.bf16.mxu0 0
    %543 = vmatmul.mubr.bf16.gmra.mrb[0].mxu0 %v508
    %v544 = vpop.f32.mrb[0].mxu0
    %v545 = vadd.f32 %v494, %v544
    %v546 = vpop.f32.mrb[0].mxu0
    %v547 = vpop.f32.mrb[0].mxu0
    %v548 = vpop.f32.mrb[0].mxu0
    %549 = vdwg.mxu0
    %v550 = vmax.f32 %v545, 0.0
    %v551 = vpack.c.bf16 %v147, %v147
    %v552 = vpack.c.bf16 %v148, %v148
    %v553 = vld [vmem:[#allocation5] sm:$0xff]
    %v554 = vld [vmem:[#allocation5 + $0x8] sm:$0xff]
    %v555 = vld [vmem:[#allocation5 + $0x10] sm:$0xff]
    %v556 = vld [vmem:[#allocation5 + $0x18] sm:$0xff]
    %v557 = vld [vmem:[#allocation5 + $0x20] sm:$0xff]
    %v558 = vld [vmem:[#allocation5 + $0x28] sm:$0xff]
    %v559 = vld [vmem:[#allocation5 + $0x30] sm:$0xff]
    %v560 = vld [vmem:[#allocation5 + $0x38] sm:$0xff]
    %v561 = vld [vmem:[#allocation5 + $0x40] sm:$0xff]
    %v562 = vld [vmem:[#allocation5 + $0x48] sm:$0xff]
    %v563 = vld [vmem:[#allocation5 + $0x50] sm:$0xff]
    %v564 = vld [vmem:[#allocation5 + $0x58] sm:$0xff]
    %v565 = vld [vmem:[#allocation5 + $0x60] sm:$0xff]
    %v566 = vld [vmem:[#allocation5 + $0x68] sm:$0xff]
    %v567 = vld [vmem:[#allocation5 + $0x70] sm:$0xff]
    %v568 = vld [vmem:[#allocation5 + $0x78] sm:$0xff]
    %v569 = vld [vmem:[#allocation5 + $0x80] sm:$0xff]
    %v570 = vld [vmem:[#allocation5 + $0x88] sm:$0xff]
    %v571 = vld [vmem:[#allocation5 + $0x90] sm:$0xff]
    %v572 = vld [vmem:[#allocation5 + $0x98] sm:$0xff]
    %v573 = vld [vmem:[#allocation5 + $0xa0] sm:$0xff]
    %v574 = vld [vmem:[#allocation5 + $0xa8] sm:$0xff]
    %v575 = vld [vmem:[#allocation5 + $0xb0] sm:$0xff]
    %v576 = vld [vmem:[#allocation5 + $0xb8] sm:$0xff]
    %v577 = vld [vmem:[#allocation5 + $0xc0] sm:$0xff]
    %v578 = vld [vmem:[#allocation5 + $0xc8] sm:$0xff]
    %v579 = vld [vmem:[#allocation5 + $0xd0] sm:$0xff]
    %v580 = vld [vmem:[#allocation5 + $0xd8] sm:$0xff]
    %v581 = vld [vmem:[#allocation5 + $0xe0] sm:$0xff]
    %v582 = vld [vmem:[#allocation5 + $0xe8] sm:$0xff]
    %v583 = vld [vmem:[#allocation5 + $0xf0] sm:$0xff]
    %v584 = vld [vmem:[#allocation5 + $0xf8] sm:$0xff]
    %v585 = vpack.c.bf16 %v550, %v550
    %v586 = vld [vmem:[%s6] sm:$0xff]
    %v587 = vld [vmem:[%s6 + $0x8] sm:$0xff]
    %v588 = vld [vmem:[%s6 + $0x10] sm:$0xff]
    %v589 = vld [vmem:[%s6 + $0x18] sm:$0xff]
    %v594 = vunpack.c.l.b16 %v586
    %v595 = vunpack.c.h.b16 %v586
    %v596 = vunpack.c.l.b16 %v587
    %v597 = vunpack.c.h.b16 %v587
    %v598 = vunpack.c.l.b16 %v588
    %v599 = vunpack.c.h.b16 %v588
    %v600 = vunpack.c.l.b16 %v589
    %v601 = vunpack.c.h.b16 %v589
    %v602 = vpack.c.b16 %v596, %v594
    %v603 = vpack.c.b16 %v597, %v595
    %v604 = vpack.c.b16 %v600, %v598
    %v605 = vpack.c.b16 %v601, %v599
    %v611 = vsel %vm96, %v585, 0
    %613 = vmatprep.subr.bf16.mxu0 %v603
    %614 = vmatpush1.bf16.msra.mxu0 %v602
    %615 = vmatprep.subr.bf16.mxu0 %v605
    %616 = vmatpush1.bf16.msra.mxu0 %v604
    %617 = vmatprep.subr.bf16.mxu0 0
    %618 = vmatpush1.bf16.msra.mxu0 0
    %619 = vmatprep.subr.bf16.mxu0 0
    %620 = vmatpush1.bf16.msra.mxu0 0
    %621 = vmatprep.subr.bf16.mxu0 0
    %622 = vmatpush1.bf16.msra.mxu0 0
    %623 = vmatprep.subr.bf16.mxu0 0
    %624 = vmatpush1.bf16.msra.mxu0 0
    %625 = vmatprep.subr.bf16.mxu0 0
    %626 = vmatpush1.bf16.msra.mxu0 0
    %627 = vmatprep.subr.bf16.mxu0 0
    %628 = vmatpush1.bf16.msra.mxu0 0
    %629 = vmatprep.subr.bf16.mxu0 0
    %630 = vmatpush1.bf16.msra.mxu0 0
    %631 = vmatprep.subr.bf16.mxu0 0
    %632 = vmatpush1.bf16.msra.mxu0 0
    %633 = vmatprep.subr.bf16.mxu0 0
    %634 = vmatpush1.bf16.msra.mxu0 0
    %635 = vmatprep.subr.bf16.mxu0 0
    %636 = vmatpush1.bf16.msra.mxu0 0
    %637 = vmatprep.subr.bf16.mxu0 0
    %638 = vmatpush1.bf16.msra.mxu0 0
    %639 = vmatprep.subr.bf16.mxu0 0
    %640 = vmatpush1.bf16.msra.mxu0 0
    %641 = vmatprep.subr.bf16.mxu0 0
    %642 = vmatpush1.bf16.msra.mxu0 0
    %643 = vmatprep.subr.bf16.mxu0 0
    %644 = vmatpush1.bf16.msra.mxu0 0
    %645 = vmatprep.mubr.bf16.mxu0 0
    %646 = vmatmul.mubr.bf16.gmra.mrb[0].mxu0 %v611
    %v647 = vpop.f32.mrb[0].mxu0
    %v648 = vadd.f32 0.0, %v647
    %v649 = vpop.f32.mrb[0].mxu0
    %v650 = vadd.f32 0.0, %v649
    %v651 = vpop.f32.mrb[0].mxu0
    %v652 = vpop.f32.mrb[0].mxu0
    %653 = vdwg.mxu0
    %v686 = vunpack.c.l.b16 %v553
    %v687 = vunpack.c.h.b16 %v553
    %v688 = vunpack.c.l.b16 %v554
    %v689 = vunpack.c.h.b16 %v554
    %v690 = vunpack.c.l.b16 %v555
    %v691 = vunpack.c.h.b16 %v555
    %v692 = vunpack.c.l.b16 %v556
    %v693 = vunpack.c.h.b16 %v556
    %v694 = vunpack.c.l.b16 %v557
    %v695 = vunpack.c.h.b16 %v557
    %v696 = vunpack.c.l.b16 %v558
    %v697 = vunpack.c.h.b16 %v558
    %v698 = vunpack.c.l.b16 %v559
    %v699 = vunpack.c.h.b16 %v559
    %v700 = vunpack.c.l.b16 %v560
    %v701 = vunpack.c.h.b16 %v560
    %v702 = vunpack.c.l.b16 %v561
    %v703 = vunpack.c.h.b16 %v561
    %v704 = vunpack.c.l.b16 %v562
    %v705 = vunpack.c.h.b16 %v562
    %v706 = vunpack.c.l.b16 %v563
    %v707 = vunpack.c.h.b16 %v563
    %v708 = vunpack.c.l.b16 %v564
    %v709 = vunpack.c.h.b16 %v564
    %v710 = vunpack.c.l.b16 %v565
    %v711 = vunpack.c.h.b16 %v565
    %v712 = vunpack.c.l.b16 %v566
    %v713 = vunpack.c.h.b16 %v566
    %v714 = vunpack.c.l.b16 %v567
    %v715 = vunpack.c.h.b16 %v567
    %v716 = vunpack.c.l.b16 %v568
    %v717 = vunpack.c.h.b16 %v568
    %v718 = vunpack.c.l.b16 %v569
    %v719 = vunpack.c.h.b16 %v569
    %v720 = vunpack.c.l.b16 %v570
    %v721 = vunpack.c.h.b16 %v570
    %v722 = vunpack.c.l.b16 %v571
    %v723 = vunpack.c.h.b16 %v571
    %v724 = vunpack.c.l.b16 %v572
    %v725 = vunpack.c.h.b16 %v572
    %v726 = vunpack.c.l.b16 %v573
    %v727 = vunpack.c.h.b16 %v573
    %v728 = vunpack.c.l.b16 %v574
    %v729 = vunpack.c.h.b16 %v574
    %v730 = vunpack.c.l.b16 %v575
    %v731 = vunpack.c.h.b16 %v575
    %v732 = vunpack.c.l.b16 %v576
    %v733 = vunpack.c.h.b16 %v576
    %v734 = vunpack.c.l.b16 %v577
    %v735 = vunpack.c.h.b16 %v577
    %v736 = vunpack.c.l.b16 %v578
    %v737 = vunpack.c.h.b16 %v578
    %v738 = vunpack.c.l.b16 %v579
    %v739 = vunpack.c.h.b16 %v579
    %v740 = vunpack.c.l.b16 %v580
    %v741 = vunpack.c.h.b16 %v580
    %v742 = vunpack.c.l.b16 %v581
    %v743 = vunpack.c.h.b16 %v581
    %v744 = vunpack.c.l.b16 %v582
    %v745 = vunpack.c.h.b16 %v582
    %v746 = vunpack.c.l.b16 %v583
    %v747 = vunpack.c.h.b16 %v583
    %v748 = vunpack.c.l.b16 %v584
    %v749 = vunpack.c.h.b16 %v584
    %v750 = vpack.c.b16 %v688, %v686
    %v751 = vpack.c.b16 %v689, %v687
    %v752 = vpack.c.b16 %v692, %v690
    %v753 = vpack.c.b16 %v693, %v691
    %v754 = vpack.c.b16 %v696, %v694
    %v755 = vpack.c.b16 %v697, %v695
    %v756 = vpack.c.b16 %v700, %v698
    %v757 = vpack.c.b16 %v701, %v699
    %v758 = vpack.c.b16 %v704, %v702
    %v759 = vpack.c.b16 %v705, %v703
    %v760 = vpack.c.b16 %v708, %v706
    %v761 = vpack.c.b16 %v709, %v707
    %v762 = vpack.c.b16 %v712, %v710
    %v763 = vpack.c.b16 %v713, %v711
    %v764 = vpack.c.b16 %v716, %v714
    %v765 = vpack.c.b16 %v717, %v715
    %v766 = vpack.c.b16 %v720, %v718
    %v767 = vpack.c.b16 %v721, %v719
    %v768 = vpack.c.b16 %v724, %v722
    %v769 = vpack.c.b16 %v725, %v723
    %v770 = vpack.c.b16 %v728, %v726
    %v771 = vpack.c.b16 %v729, %v727
    %v772 = vpack.c.b16 %v732, %v730
    %v773 = vpack.c.b16 %v733, %v731
    %v774 = vpack.c.b16 %v736, %v734
    %v775 = vpack.c.b16 %v737, %v735
    %v776 = vpack.c.b16 %v740, %v738
    %v777 = vpack.c.b16 %v741, %v739
    %v778 = vpack.c.b16 %v744, %v742
    %v779 = vpack.c.b16 %v745, %v743
    %v780 = vpack.c.b16 %v748, %v746
    %v781 = vpack.c.b16 %v749, %v747
    %814 = vmatprep.subr.bf16.mxu0 %v751
    %815 = vmatpush1.bf16.msra.mxu0 %v750
    %816 = vmatprep.subr.bf16.mxu0 %v753
    %817 = vmatpush1.bf16.msra.mxu0 %v752
    %818 = vmatprep.subr.bf16.mxu0 %v755
    %819 = vmatpush1.bf16.msra.mxu0 %v754
    %820 = vmatprep.subr.bf16.mxu0 %v757
    %821 = vmatpush1.bf16.msra.mxu0 %v756
    %822 = vmatprep.subr.bf16.mxu0 %v759
    %823 = vmatpush1.bf16.msra.mxu0 %v758
    %824 = vmatprep.subr.bf16.mxu0 %v761
    %825 = vmatpush1.bf16.msra.mxu0 %v760
    %826 = vmatprep.subr.bf16.mxu0 %v763
    %827 = vmatpush1.bf16.msra.mxu0 %v762
    %828 = vmatprep.subr.bf16.mxu0 %v765
    %829 = vmatpush1.bf16.msra.mxu0 %v764
    %830 = vmatprep.subr.bf16.mxu0 %v767
    %831 = vmatpush1.bf16.msra.mxu0 %v766
    %832 = vmatprep.subr.bf16.mxu0 %v769
    %833 = vmatpush1.bf16.msra.mxu0 %v768
    %834 = vmatprep.subr.bf16.mxu0 %v771
    %835 = vmatpush1.bf16.msra.mxu0 %v770
    %836 = vmatprep.subr.bf16.mxu0 %v773
    %837 = vmatpush1.bf16.msra.mxu0 %v772
    %838 = vmatprep.subr.bf16.mxu0 %v775
    %839 = vmatpush1.bf16.msra.mxu0 %v774
    %840 = vmatprep.subr.bf16.mxu0 %v777
    %841 = vmatpush1.bf16.msra.mxu0 %v776
    %842 = vmatprep.subr.bf16.mxu0 %v779
    %843 = vmatpush1.bf16.msra.mxu0 %v778
    %844 = vmatprep.subr.bf16.mxu0 %v781
    %845 = vmatpush1.bf16.msra.mxu0 %v780
    %846 = vmatprep.mubr.bf16.mxu0 %v552
    %847 = vmatmul.mubr.bf16.gmra.mrb[0].mxu0 %v551
    %v848 = vpop.f32.mrb[0].mxu0
    %v849 = vadd.f32 %v648, %v848
    %v850 = vpop.f32.mrb[0].mxu0
    %v851 = vadd.f32 %v650, %v850
    %v852 = vpop.f32.mrb[0].mxu0
    %v853 = vpop.f32.mrb[0].mxu0
    %854 = vdwg.mxu0
    %v855 = vlaneseq
    %v856 = vshrl.u32 %v855, 7
    %v857 = vsub.s32 5, %v856
    %v858 = vrot.slane %v60, %v857
    %v859 = vlaneseq
    %v860 = vshrl.u32 %v859, 7
    %v861 = vsub.s32 5, %v860
    %v862 = vrot.slane %v61, %v861
    %v863 = vadd.f32 %v849, %v858
    %v864 = vadd.f32 %v851, %v862
    %v865 = vmax.f32 %v863, 0.0
    %v866 = vmax.f32 %v864, 0.0
    %v867 = vpack.c.bf16 %v865, %v865
    %v868 = vpack.c.bf16 %v866, %v866
    %v869 = vld [vmem:[%s7] sm:$0xf]
    %v870 = vld [vmem:[%s7 + $0x4] sm:$0xf]
    %v871 = vld [vmem:[%s7 + $0x8] sm:$0xf]
    %v872 = vld [vmem:[%s7 + $0xc] sm:$0xf]
    %v873 = vld [vmem:[%s7 + $0x10] sm:$0xf]
    %v874 = vld [vmem:[%s7 + $0x14] sm:$0xf]
    %v875 = vld [vmem:[%s7 + $0x18] sm:$0xf]
    %v876 = vld [vmem:[%s7 + $0x1c] sm:$0xf]
    %v877 = vld [vmem:[%s7 + $0x20] sm:$0xf]
    %v878 = vld [vmem:[%s7 + $0x24] sm:$0xf]
    %v879 = vld [vmem:[%s7 + $0x28] sm:$0xf]
    %v880 = vld [vmem:[%s7 + $0x2c] sm:$0xf]
    %v881 = vld [vmem:[%s7 + $0x30] sm:$0xf]
    %v882 = vld [vmem:[%s7 + $0x34] sm:$0xf]
    %v883 = vld [vmem:[%s7 + $0x38] sm:$0xf]
    %v884 = vld [vmem:[%s7 + $0x3c] sm:$0xf]
    %v885 = vld [vmem:[%s7 + $0x40] sm:$0xf]
    %v886 = vld [vmem:[%s7 + $0x44] sm:$0xf]
    %v887 = vld [vmem:[%s7 + $0x48] sm:$0xf]
    %v888 = vld [vmem:[%s7 + $0x4c] sm:$0xf]
    %v889 = vld [vmem:[%s7 + $0x50] sm:$0xf]
    %v890 = vld [vmem:[%s7 + $0x54] sm:$0xf]
    %v891 = vld [vmem:[%s7 + $0x58] sm:$0xf]
    %v892 = vld [vmem:[%s7 + $0x5c] sm:$0xf]
    %v893 = vld [vmem:[%s7 + $0x60] sm:$0xf]
    %v894 = vld [vmem:[%s7 + $0x64] sm:$0xf]
    %v895 = vld [vmem:[%s7 + $0x68] sm:$0xf]
    %v896 = vld [vmem:[%s7 + $0x6c] sm:$0xf]
    %v897 = vld [vmem:[%s7 + $0x70] sm:$0xf]
    %v898 = vld [vmem:[%s7 + $0x74] sm:$0xf]
    %v899 = vld [vmem:[%s7 + $0x78] sm:$0xf]
    %v900 = vld [vmem:[%s7 + $0x7c] sm:$0xf]
    %v901 = vlaneseq
    %v902 = vshrl.u32 %v901, 7
    %v903 = vsub.s32 0, %v902
    %v904 = vrot.slane %v62, %v903
    %v937 = vunpack.c.l.b16 %v869
    %v938 = vunpack.c.l.b16 %v870
    %v939 = vunpack.c.l.b16 %v871
    %v940 = vunpack.c.l.b16 %v872
    %v941 = vunpack.c.l.b16 %v873
    %v942 = vunpack.c.l.b16 %v874
    %v943 = vunpack.c.l.b16 %v875
    %v944 = vunpack.c.l.b16 %v876
    %v945 = vunpack.c.l.b16 %v877
    %v946 = vunpack.c.l.b16 %v878
    %v947 = vunpack.c.l.b16 %v879
    %v948 = vunpack.c.l.b16 %v880
    %v949 = vunpack.c.l.b16 %v881
    %v950 = vunpack.c.l.b16 %v882
    %v951 = vunpack.c.l.b16 %v883
    %v952 = vunpack.c.l.b16 %v884
    %v953 = vunpack.c.l.b16 %v885
    %v954 = vunpack.c.l.b16 %v886
    %v955 = vunpack.c.l.b16 %v887
    %v956 = vunpack.c.l.b16 %v888
    %v957 = vunpack.c.l.b16 %v889
    %v958 = vunpack.c.l.b16 %v890
    %v959 = vunpack.c.l.b16 %v891
    %v960 = vunpack.c.l.b16 %v892
    %v961 = vunpack.c.l.b16 %v893
    %v962 = vunpack.c.l.b16 %v894
    %v963 = vunpack.c.l.b16 %v895
    %v964 = vunpack.c.l.b16 %v896
    %v965 = vunpack.c.l.b16 %v897
    %v966 = vunpack.c.l.b16 %v898
    %v967 = vunpack.c.l.b16 %v899
    %v968 = vunpack.c.l.b16 %v900
    %v969 = vpack.c.b16 %v938, %v937
    %v970 = vpack.c.b16 %v940, %v939
    %v971 = vpack.c.b16 %v942, %v941
    %v972 = vpack.c.b16 %v944, %v943
    %v973 = vpack.c.b16 %v946, %v945
    %v974 = vpack.c.b16 %v948, %v947
    %v975 = vpack.c.b16 %v950, %v949
    %v976 = vpack.c.b16 %v952, %v951
    %v977 = vpack.c.b16 %v954, %v953
    %v978 = vpack.c.b16 %v956, %v955
    %v979 = vpack.c.b16 %v958, %v957
    %v980 = vpack.c.b16 %v960, %v959
    %v981 = vpack.c.b16 %v962, %v961
    %v982 = vpack.c.b16 %v964, %v963
    %v983 = vpack.c.b16 %v966, %v965
    %v984 = vpack.c.b16 %v968, %v967
    %1001 = vmatprep.subr.bf16.mxu0 0
    %1002 = vmatpush1.bf16.msra.mxu0 %v969
    %1003 = vmatprep.subr.bf16.mxu0 0
    %1004 = vmatpush1.bf16.msra.mxu0 %v970
    %1005 = vmatprep.subr.bf16.mxu0 0
    %1006 = vmatpush1.bf16.msra.mxu0 %v971
    %1007 = vmatprep.subr.bf16.mxu0 0
    %1008 = vmatpush1.bf16.msra.mxu0 %v972
    %1009 = vmatprep.subr.bf16.mxu0 0
    %1010 = vmatpush1.bf16.msra.mxu0 %v973
    %1011 = vmatprep.subr.bf16.mxu0 0
    %1012 = vmatpush1.bf16.msra.mxu0 %v974
    %1013 = vmatprep.subr.bf16.mxu0 0
    %1014 = vmatpush1.bf16.msra.mxu0 %v975
    %1015 = vmatprep.subr.bf16.mxu0 0
    %1016 = vmatpush1.bf16.msra.mxu0 %v976
    %1017 = vmatprep.subr.bf16.mxu0 0
    %1018 = vmatpush1.bf16.msra.mxu0 %v977
    %1019 = vmatprep.subr.bf16.mxu0 0
    %1020 = vmatpush1.bf16.msra.mxu0 %v978
    %1021 = vmatprep.subr.bf16.mxu0 0
    %1022 = vmatpush1.bf16.msra.mxu0 %v979
    %1023 = vmatprep.subr.bf16.mxu0 0
    %1024 = vmatpush1.bf16.msra.mxu0 %v980
    %1025 = vmatprep.subr.bf16.mxu0 0
    %1026 = vmatpush1.bf16.msra.mxu0 %v981
    %1027 = vmatprep.subr.bf16.mxu0 0
    %1028 = vmatpush1.bf16.msra.mxu0 %v982
    %1029 = vmatprep.subr.bf16.mxu0 0
    %1030 = vmatpush1.bf16.msra.mxu0 %v983
    %1031 = vmatprep.subr.bf16.mxu0 0
    %1032 = vmatpush1.bf16.msra.mxu0 %v984
    %1033 = vmatprep.mubr.bf16.mxu0 %v868
    %1034 = vmatmul.mubr.bf16.gmra.mrb[0].mxu0 %v867
    %v1035 = vpop.f32.mrb[0].mxu0
    %v1036 = vadd.f32 %v904, %v1035
    %v1037 = vpop.f32.mrb[0].mxu0
    %v1038 = vpop.f32.mrb[0].mxu0
    %v1039 = vpop.f32.mrb[0].mxu0
    %1040 = vdwg.mxu0
    %1041 = vst.msk [vmem:[#allocation7] sm:$0xff] %vm98, %v1036
    // Predicated region
    $region42: #{tpu_custom_call.1} parent=1 // pred_check
      _
    $region43: #{tpu_custom_call.1} parent=1 // pred_check_branch
      %1043 = sbr.rel (0) target = $region45
    $region44: #{tpu_custom_call.1} parent=1 // pred_region
      %s1045 = ssub.s32 128, 128
      %1046 = vsyncadd [#allocation4], %s1045
      %s1048 = sshll.u32 [#allocation7], 4
      %s1049 = int_to_ptr.vmem [resolvable:$true] %s1048
      %1051 = dma.vmem_to_hbm [thread:$0]  %s1049, 128, %s8, [#allocation4]
    $region45: #{tpu_custom_call.1} parent=1 // pred_fallthru
      _
    // Predicated region
    $region46: #{tpu_custom_call.1} parent=1 // pred_check
      _
    $region47: #{tpu_custom_call.1} parent=1 // pred_check_branch
      %1053 = sbr.rel (0) target = $region49
    $region48: #{tpu_custom_call.1} parent=1 // pred_region
      %1054 = dma.done [#allocation4], 128
    $region49: #{tpu_custom_call.1} parent=1 // pred_fallthru
      _
    %1055 = vsyncpa [#allocation3], 1
    %1056 = vsyncpa [#allocation6], 1
    %1057 = vsyncpa [#allocation4], 1

</llo_original>
